<compile_context>
chip_gen: v5e
topology: v5e:2x2
jax: 0.10.0
libtpu: 0.0.40
codegen_flags: <defaults>
</compile_context>

<pallas_src>
import jax
import jax.numpy as jnp
from jax.experimental import pallas as pl
from jax.experimental.pallas import tpu as pltpu

LANE = 128      # TPU vreg lane width (last dim)
SUBLANE = 8     # f32 sublane height (second-to-last dim)


def _round_up(n, m):
    return ((n + m - 1) // m) * m


def ppo_policy_kernel(x_ref, w1_ref, b1_ref, w2_ref, b2_ref, w3_ref, b3_ref,
                      o_ref):
    # fc1 + relu: cast the activation tile to the stored weight dtype (bf16 by
    # default -> half the MXU input bytes); accumulate in f32.
    x = x_ref[...].astype(w1_ref.dtype)
    h1 = jnp.dot(x, w1_ref[...], preferred_element_type=jnp.float32)
    h1 = jnp.maximum(h1 + b1_ref[...], 0.0)
    # fc2 + relu
    h2 = jnp.dot(h1.astype(w2_ref.dtype), w2_ref[...],
                 preferred_element_type=jnp.float32)
    h2 = jnp.maximum(h2 + b2_ref[...], 0.0)
    # fc3: action dim kept at its natural width -> no padded lanes, no mask.
    logits = jnp.dot(h2.astype(w3_ref.dtype), w3_ref[...],
                     preferred_element_type=jnp.float32) + b3_ref[...]
    # Numerically stable softmax over the action dim.
    m = jnp.max(logits, axis=-1, keepdims=True)
    e = jnp.exp(logits - m)
    denom = jnp.sum(e, axis=-1, keepdims=True)
    # approx=False: exact normalization (still EUP, effectively free).
    o_ref[...] = (e * pl.reciprocal(denom, approx=False)).astype(o_ref.dtype)


def init_params(key, state_size, action_size, hidden_size):
    """Deterministic synthetic init (shapes match the nn.Linear layers)."""
    ks = jax.random.split(key, 6)

    def lin(kw, kb, fan_in, fan_out):
        bound = 1.0 / jnp.sqrt(fan_in)
        w = jax.random.uniform(kw, (fan_in, fan_out), jnp.float32, -bound, bound)
        b = jax.random.uniform(kb, (1, fan_out), jnp.float32, -bound, bound)
        return w, b

    w1, b1 = lin(ks[0], ks[1], state_size, hidden_size)
    w2, b2 = lin(ks[2], ks[3], hidden_size, hidden_size)
    w3, b3 = lin(ks[4], ks[5], hidden_size, action_size)
    return w1, b1, w2, b2, w3, b3


def pad_params(w1, b1, w2, b2, w3, b3, weight_dtype=jnp.bfloat16):
    """Pad ONLY the hidden dim to the 128-lane width (done once, stored).

    State (w1 rows) and action (w3 cols / b3) dims stay at their natural
    widths, so streamed x tiles and output tiles carry no padded HBM bytes.
    Zero-padded hidden lanes stay exactly zero through relu, so the result is
    unchanged. Weights default to bf16; biases stay f32.
    """
    S, H = w1.shape
    A = w3.shape[1]
    Hp = _round_up(H, LANE)

    def pad_cols(a, cols):
        return jnp.pad(a, ((0, 0), (0, cols - a.shape[1])))

    def pad_rows(a, rows):
        return jnp.pad(a, ((0, rows - a.shape[0]), (0, 0)))

    return dict(
        w1=pad_cols(w1, Hp).astype(weight_dtype), b1=pad_cols(b1, Hp),
        w2=pad_rows(pad_cols(w2, Hp), Hp).astype(weight_dtype), b2=pad_cols(b2, Hp),
        w3=pad_rows(w3, Hp).astype(weight_dtype), b3=b3,
        state_size=S, hidden_size=H, action_size=A,
    )


def ppo_policy_forward(x, p, *, tile_b=1024):
    """x: [B, state_size] f32. Returns softmax probabilities [B, action_size]."""
    B, S = x.shape
    assert S == p["state_size"]
    A = p["action_size"]
    Hp = p["w1"].shape[1]

    # Batch tiling: multiples of the 8-row sublane; cap the tile at ~Bp/2 so
    # the grid has >= 2 steps whenever possible (keeps both v7x TensorCores
    # busy); ~1k-row tiles amortize the per-grid-step overhead.
    Bp = _round_up(B, SUBLANE)
    if Bp >= 2 * SUBLANE:
        tile_b = min(_round_up(tile_b, SUBLANE),
                     _round_up(pl.cdiv(Bp, 2), SUBLANE))
    else:
        tile_b = Bp
    Bp = _round_up(Bp, tile_b)

    # Only the batch dim is ever padded; feature dim stays natural.
    xp = x if Bp == B else jnp.pad(x, ((0, Bp - B), (0, 0)))

    w_bytes = sum(int(p[k].size) * p[k].dtype.itemsize
                  for k in ("w1", "b1", "w2", "b2", "w3", "b3"))
    cost = pl.CostEstimate(
        flops=2 * Bp * (S * Hp + Hp * Hp + Hp * A),
        transcendentals=Bp * (A + 1),
        bytes_accessed=int(xp.size) * xp.dtype.itemsize + w_bytes + Bp * A * 4,
    )

    out = pl.pallas_call(
        ppo_policy_kernel,
        out_shape=jax.ShapeDtypeStruct((Bp, A), jnp.float32),
        grid=(Bp // tile_b,),
        in_specs=[
            # x tiles stream along the batch grid axis (natural feature width;
            # last block dim == full array dim, so the (8,128) rule is met).
            pl.BlockSpec((tile_b, S), lambda i: (i, 0)),
            # Weights/biases: same full block every step -> VMEM-resident.
            pl.BlockSpec(p["w1"].shape, lambda i: (0, 0)),
            pl.BlockSpec(p["b1"].shape, lambda i: (0, 0)),
            pl.BlockSpec(p["w2"].shape, lambda i: (0, 0)),
            pl.BlockSpec(p["b2"].shape, lambda i: (0, 0)),
            pl.BlockSpec(p["w3"].shape, lambda i: (0, 0)),
            pl.BlockSpec(p["b3"].shape, lambda i: (0, 0)),
        ],
        # Output keeps the natural action width: 16x less HBM writeback than a
        # 128-lane padded output and no post-kernel lane slice.
        out_specs=pl.BlockSpec((tile_b, A), lambda i: (i, 0)),
        compiler_params=pltpu.CompilerParams(
            dimension_semantics=("parallel",)),
        cost_estimate=cost,
    )(xp, p["w1"], p["b1"], p["w2"], p["b2"], p["w3"], p["b3"])

    return out if Bp == B else out[:B]


def reference_forward(x, w1, b1, w2, b2, w3, b3):
    hi = jax.lax.Precision.HIGHEST
    h1 = jnp.maximum(jnp.dot(x, w1, precision=hi) + b1, 0.0)
    h2 = jnp.maximum(jnp.dot(h1, w2, precision=hi) + b2, 0.0)
    logits = jnp.dot(h2, w3, precision=hi) + b3
    return jax.nn.softmax(logits, axis=-1)


if __name__ == "__main__":
    key = jax.random.PRNGKey(0)
    k_x, k_p = jax.random.split(key)

    batch, state_size, action_size, hidden_size = 32, 16, 8, 64
    x = jax.random.normal(k_x, (batch, state_size), jnp.float32)
    raw_params = init_params(k_p, state_size, action_size, hidden_size)
    ref = reference_forward(x, *raw_params)

    # f32-weight path: tight check against the pure-JAX reference.
    out_f32 = jax.block_until_ready(
        ppo_policy_forward(x, pad_params(*raw_params, weight_dtype=jnp.float32)))
    assert out_f32.shape == (batch, action_size)
    assert jnp.allclose(out_f32, ref, atol=1e-4, rtol=1e-4)

    # bf16-weight path (the default / fast path): looser tolerance (rounding).
    out_bf16 = jax.block_until_ready(
        ppo_policy_forward(x, pad_params(*raw_params)))
    assert out_bf16.shape == (batch, action_size)
    assert jnp.allclose(out_bf16, ref, atol=2e-2, rtol=2e-2)
    assert jnp.allclose(jnp.sum(out_bf16, axis=-1), jnp.ones((batch,)), atol=1e-3)

    print("KERNEL_OK")
</pallas_src>

<mosaic_0001>
module attributes {stable_mosaic.version = 11 : i64} {
  func.func @ppo_policy_kernel(%arg0: i32, %arg1: memref<16x16xf32, #tpu.memory_space<vmem>>, %arg2: memref<16x128xf32, #tpu.memory_space<vmem>>, %arg3: memref<1x128xf32, #tpu.memory_space<vmem>>, %arg4: memref<128x128xf32, #tpu.memory_space<vmem>>, %arg5: memref<1x128xf32, #tpu.memory_space<vmem>>, %arg6: memref<128x8xf32, #tpu.memory_space<vmem>>, %arg7: memref<1x8xf32, #tpu.memory_space<vmem>>, %arg8: memref<16x8xf32, #tpu.memory_space<vmem>>) attributes {dimension_semantics = [#tpu.dimension_semantics<parallel>], iteration_bounds = array<i64: 2>, scalar_prefetch = 0 : i64, scratch_operands = 0 : i64, tpu.core_type = #tpu.core_type<tc>, window_params = [{transform_indices = @transform_0, window_bounds = array<i64: 16, 16>}, {pipeline_mode = #tpu.pipeline_mode<synchronous>, transform_indices = @transform_1, window_bounds = array<i64: 16, 128>}, {pipeline_mode = #tpu.pipeline_mode<synchronous>, transform_indices = @transform_2, window_bounds = array<i64: 1, 128>}, {pipeline_mode = #tpu.pipeline_mode<synchronous>, transform_indices = @transform_3, window_bounds = array<i64: 128, 128>}, {pipeline_mode = #tpu.pipeline_mode<synchronous>, transform_indices = @transform_4, window_bounds = array<i64: 1, 128>}, {pipeline_mode = #tpu.pipeline_mode<synchronous>, transform_indices = @transform_5, window_bounds = array<i64: 128, 8>}, {pipeline_mode = #tpu.pipeline_mode<synchronous>, transform_indices = @transform_6, window_bounds = array<i64: 1, 8>}, {transform_indices = @transform_7, window_bounds = array<i64: 16, 8>}]} {
    %c0 = arith.constant 0 : index
    %c0_0 = arith.constant 0 : index
    %0 = vector.load %arg1[%c0, %c0_0] : memref<16x16xf32, #tpu.memory_space<vmem>>, vector<16x16xf32>
    %c0_1 = arith.constant 0 : index
    %c0_2 = arith.constant 0 : index
    %1 = vector.load %arg2[%c0_1, %c0_2] : memref<16x128xf32, #tpu.memory_space<vmem>>, vector<16x128xf32>
    %cst = arith.constant dense<0.000000e+00> : vector<16x128xf32>
    %2 = tpu.matmul %0, %1, %cst {dimension_numbers = #tpu.dot_dimension_numbers<[1], [0], [0], [1], [0, 0, 1, 1], [], []>} : vector<16x16xf32>, vector<16x128xf32>, vector<16x128xf32> -> vector<16x128xf32>
    %c0_3 = arith.constant 0 : index
    %c0_4 = arith.constant 0 : index
    %3 = vector.load %arg3[%c0_3, %c0_4] : memref<1x128xf32, #tpu.memory_space<vmem>>, vector<1x128xf32>
    %4 = vector.broadcast %3 : vector<1x128xf32> to vector<16x128xf32>
    %5 = arith.addf %2, %4 : vector<16x128xf32>
    %cst_5 = arith.constant 0.000000e+00 : f32
    %6 = vector.broadcast %cst_5 : f32 to vector<16x128xf32>
    %7 = arith.maximumf %5, %6 : vector<16x128xf32>
    %c0_6 = arith.constant 0 : index
    %c0_7 = arith.constant 0 : index
    %8 = vector.load %arg4[%c0_6, %c0_7] : memref<128x128xf32, #tpu.memory_space<vmem>>, vector<128x128xf32>
    %cst_8 = arith.constant dense<0.000000e+00> : vector<16x128xf32>
    %9 = tpu.matmul %7, %8, %cst_8 {dimension_numbers = #tpu.dot_dimension_numbers<[1], [0], [0], [1], [0, 0, 1, 1], [], []>} : vector<16x128xf32>, vector<128x128xf32>, vector<16x128xf32> -> vector<16x128xf32>
    %c0_9 = arith.constant 0 : index
    %c0_10 = arith.constant 0 : index
    %10 = vector.load %arg5[%c0_9, %c0_10] : memref<1x128xf32, #tpu.memory_space<vmem>>, vector<1x128xf32>
    %11 = vector.broadcast %10 : vector<1x128xf32> to vector<16x128xf32>
    %12 = arith.addf %9, %11 : vector<16x128xf32>
    %cst_11 = arith.constant 0.000000e+00 : f32
    %13 = vector.broadcast %cst_11 : f32 to vector<16x128xf32>
    %14 = arith.maximumf %12, %13 : vector<16x128xf32>
    %c0_12 = arith.constant 0 : index
    %c0_13 = arith.constant 0 : index
    %15 = vector.load %arg6[%c0_12, %c0_13] : memref<128x8xf32, #tpu.memory_space<vmem>>, vector<128x8xf32>
    %cst_14 = arith.constant dense<0.000000e+00> : vector<16x8xf32>
    %16 = tpu.matmul %14, %15, %cst_14 {dimension_numbers = #tpu.dot_dimension_numbers<[1], [0], [0], [1], [0, 0, 1, 1], [], []>} : vector<16x128xf32>, vector<128x8xf32>, vector<16x8xf32> -> vector<16x8xf32>
    %c0_15 = arith.constant 0 : index
    %c0_16 = arith.constant 0 : index
    %17 = vector.load %arg7[%c0_15, %c0_16] : memref<1x8xf32, #tpu.memory_space<vmem>>, vector<1x8xf32>
    %18 = vector.broadcast %17 : vector<1x8xf32> to vector<16x8xf32>
    %19 = arith.addf %16, %18 : vector<16x8xf32>
    %cst_17 = arith.constant dense<0xFF800000> : vector<16xf32>
    %20 = vector.multi_reduction <maximumf>, %19, %cst_17 [1] : vector<16x8xf32> to vector<16xf32>
    %21 = vector.shape_cast %20 : vector<16xf32> to vector<16x1xf32>
    %22 = vector.broadcast %21 : vector<16x1xf32> to vector<16x8xf32>
    %23 = arith.subf %19, %22 : vector<16x8xf32>
    %24 = math.exp %23 : vector<16x8xf32>
    %cst_18 = arith.constant dense<0.000000e+00> : vector<16xf32>
    %25 = vector.multi_reduction <add>, %24, %cst_18 [1] : vector<16x8xf32> to vector<16xf32>
    %26 = vector.shape_cast %25 : vector<16xf32> to vector<16x1xf32>
    %27 = tpu.reciprocal %26 : vector<16x1xf32> -> vector<16x1xf32>
    %28 = vector.broadcast %27 : vector<16x1xf32> to vector<16x8xf32>
    %29 = arith.mulf %24, %28 : vector<16x8xf32>
    %c0_19 = arith.constant 0 : index
    %c0_20 = arith.constant 0 : index
    %30 = vector.load %arg8[%c0_19, %c0_20] : memref<16x8xf32, #tpu.memory_space<vmem>>, vector<16x8xf32>
    tpu.vector_store %arg8[%c0_19, %c0_20], %29 {strides = array<i32>} : memref<16x8xf32, #tpu.memory_space<vmem>>, vector<16x8xf32>,
    return
  }
  func.func @transform_0(%arg0: i32) -> (i32, i32) {
    %c0_i32 = arith.constant 0 : i32
    %c0_i32_0 = arith.constant 0 : i32
    return %arg0, %c0_i32 : i32, i32
  }
  func.func @transform_1(%arg0: i32) -> (i32, i32) {
    %c0_i32 = arith.constant 0 : i32
    %c0_i32_0 = arith.constant 0 : i32
    %c0_i32_1 = arith.constant 0 : i32
    return %c0_i32, %c0_i32_0 : i32, i32
  }
  func.func @transform_2(%arg0: i32) -> (i32, i32) {
    %c0_i32 = arith.constant 0 : i32
    %c0_i32_0 = arith.constant 0 : i32
    %c0_i32_1 = arith.constant 0 : i32
    return %c0_i32, %c0_i32_0 : i32, i32
  }
  func.func @transform_3(%arg0: i32) -> (i32, i32) {
    %c0_i32 = arith.constant 0 : i32
    %c0_i32_0 = arith.constant 0 : i32
    %c0_i32_1 = arith.constant 0 : i32
    return %c0_i32, %c0_i32_0 : i32, i32
  }
  func.func @transform_4(%arg0: i32) -> (i32, i32) {
    %c0_i32 = arith.constant 0 : i32
    %c0_i32_0 = arith.constant 0 : i32
    %c0_i32_1 = arith.constant 0 : i32
    return %c0_i32, %c0_i32_0 : i32, i32
  }
  func.func @transform_5(%arg0: i32) -> (i32, i32) {
    %c0_i32 = arith.constant 0 : i32
    %c0_i32_0 = arith.constant 0 : i32
    %c0_i32_1 = arith.constant 0 : i32
    return %c0_i32, %c0_i32_0 : i32, i32
  }
  func.func @transform_6(%arg0: i32) -> (i32, i32) {
    %c0_i32 = arith.constant 0 : i32
    %c0_i32_0 = arith.constant 0 : i32
    %c0_i32_1 = arith.constant 0 : i32
    return %c0_i32, %c0_i32_0 : i32, i32
  }
  func.func @transform_7(%arg0: i32) -> (i32, i32) {
    %c0_i32 = arith.constant 0 : i32
    %c0_i32_0 = arith.constant 0 : i32
    return %arg0, %c0_i32 : i32, i32
  }
}

</mosaic_0001>

<llo_original>
// kernel: tpu_custom_call.1
$region0: #{tpu_custom_call.1}
  #allocation0 [shape = 'u32[]', space=smem, size = 0x4, offset = 0x4, fixed_abs, tag = 'smem constant byte address 0x4 - core index']
  #allocation1 [shape = 'u32[72,128]{1,0:T(1,128)}', space=vmem, size = 0x9000, scoped, tag = 'internal scratch']
  %s0 = inlined_call_operand.vmem [shape: f32[32,16], index: 0, kind: input, shape index: {}]
  %s1 = inlined_call_operand.vmem [shape: f32[16,128], index: 1, kind: input, shape index: {}]
  %s2 = inlined_call_operand.vmem [shape: f32[1,128], index: 2, kind: input, shape index: {}]
  %s3 = inlined_call_operand.vmem [shape: f32[128,128], index: 3, kind: input, shape index: {}]
  %s4 = inlined_call_operand.vmem [shape: f32[1,128], index: 4, kind: input, shape index: {}]
  %s5 = inlined_call_operand.vmem [shape: f32[128,8], index: 5, kind: input, shape index: {}]
  %s6 = inlined_call_operand.vmem [shape: f32[1,8], index: 6, kind: input, shape index: {}]
  %s7 = inlined_call_operand.vmem [shape: f32[32,8], index: 7, kind: output, shape index: {}]
  %s8 = sld [smem:[#allocation0]]
  $region61: #{tpu_custom_call.1} parent=0
    _
  %s10 = ssub.s32 1, %s8
  %s11 = scalar_select 0, %s10, %s8
  loop: start=0, step=1, limit=4
  $region2: #{tpu_custom_call.1} parent=0 // loop_pre_header
    _
  $region3: #{tpu_custom_call.1} parent=0 // loop_header
    %s13 = sphi 0, %s17
    %p14 = scmp.ge.s32.totalorder %s13, 4
    %s23 = sphi 0, %s25
    %s26 = sphi 0, %s23
    %s27 = sphi 0, %s26
    %s43 = sphi 0, %s27
    %s47 = sphi 0, %s47
    %s49 = sphi 0, %s47
    %s50 = sphi 0, %s49
    %s64 = sphi 0, %s50
    %s68 = sphi 0, %s68
    %s70 = sphi 0, %s68
    %s71 = sphi 0, %s70
    %s85 = sphi 0, %s71
    %s89 = sphi 0, %s89
    %s91 = sphi 0, %s89
    %s92 = sphi 0, %s91
    %s106 = sphi 0, %s92
    %s110 = sphi 0, %s110
    %s112 = sphi 0, %s110
    %s113 = sphi 0, %s112
    %s127 = sphi 0, %s113
    %s131 = sphi 0, %s131
    %s133 = sphi 0, %s131
    %s134 = sphi 0, %s133
    %s148 = sphi 0, %s134
    %s152 = sphi 0, %s152
    %s154 = sphi 0, %s152
    %s155 = sphi 0, %s154
    %s169 = sphi 0, %s155
    %s175 = sphi 0, %s177
    %s178 = sphi 0, %s175
    %s179 = sphi 0, %s178
    %s195 = sphi 0, %s179
  $region4: #{tpu_custom_call.1} parent=0 // loop_header_branch
    %16 = sbr.rel (%p14) target = $region8
  $region5: #{tpu_custom_call.1} parent=0 // loop_body
    %s18 = ssub.s32 %s13, 1
    %s19 = ssub.s32 %s13, 2
    %s20 = sadd.s32 %s13, 1
    %s21 = ssub.s32 %s13, %s20
    %p22 = scmp.eq.s32.totalorder %s21, 0
    %s24 = sadd.s32 %s23, 1
    %s25 = scalar_select %p22, %s23, %s24
    %p28 = pneg %p22
    %p29 = scmp.eq.s32.totalorder %s13, 1
    %p30 = por %p28, %p29
    %p31 = scmp.ne.s32.totalorder %s23, %s26
    %p32 = scmp.eq.s32.totalorder %s13, 0
    %p33 = por %p31, %p32
    %p34 = scmp.ne.s32.totalorder %s23, %s26
    %p35 = scmp.eq.s32.totalorder %s18, 1
    %p36 = por %p34, %p35
    %p37 = scmp.ne.s32.totalorder %s26, %s27
    %p38 = scmp.eq.s32.totalorder %s18, 0
    %p39 = por %p37, %p38
    %p40 = scmp.ne.s32.totalorder %s26, %s27
    %p41 = scmp.eq.s32.totalorder %s19, 1
    %p42 = por %p40, %p41
    %p44 = scmp.ne.s32.totalorder %s27, %s43
    %p45 = scmp.eq.s32.totalorder %s19, 0
    %p46 = por %p44, %p45
    %s48 = sadd.s32 %s47, 1
    %p51 = scmp.eq.s32.totalorder %s13, 1
    %p52 = scmp.ne.s32.totalorder %s47, %s49
    %p53 = scmp.eq.s32.totalorder %s13, 0
    %p54 = por %p52, %p53
    %p55 = scmp.ne.s32.totalorder %s47, %s49
    %p56 = scmp.eq.s32.totalorder %s18, 1
    %p57 = por %p55, %p56
    %p58 = scmp.ne.s32.totalorder %s49, %s50
    %p59 = scmp.eq.s32.totalorder %s18, 0
    %p60 = por %p58, %p59
    %p61 = scmp.ne.s32.totalorder %s49, %s50
    %p62 = scmp.eq.s32.totalorder %s19, 1
    %p63 = por %p61, %p62
    %p65 = scmp.ne.s32.totalorder %s50, %s64
    %p66 = scmp.eq.s32.totalorder %s19, 0
    %p67 = por %p65, %p66
    %s69 = sadd.s32 %s68, 1
    %p72 = scmp.eq.s32.totalorder %s13, 1
    %p73 = scmp.ne.s32.totalorder %s68, %s70
    %p74 = scmp.eq.s32.totalorder %s13, 0
    %p75 = por %p73, %p74
    %p76 = scmp.ne.s32.totalorder %s68, %s70
    %p77 = scmp.eq.s32.totalorder %s18, 1
    %p78 = por %p76, %p77
    %p79 = scmp.ne.s32.totalorder %s70, %s71
    %p80 = scmp.eq.s32.totalorder %s18, 0
    %p81 = por %p79, %p80
    %p82 = scmp.ne.s32.totalorder %s70, %s71
    %p83 = scmp.eq.s32.totalorder %s19, 1
    %p84 = por %p82, %p83
    %p86 = scmp.ne.s32.totalorder %s71, %s85
    %p87 = scmp.eq.s32.totalorder %s19, 0
    %p88 = por %p86, %p87
    %s90 = sadd.s32 %s89, 1
    %p93 = scmp.eq.s32.totalorder %s13, 1
    %p94 = scmp.ne.s32.totalorder %s89, %s91
    %p95 = scmp.eq.s32.totalorder %s13, 0
    %p96 = por %p94, %p95
    %p97 = scmp.ne.s32.totalorder %s89, %s91
    %p98 = scmp.eq.s32.totalorder %s18, 1
    %p99 = por %p97, %p98
    %p100 = scmp.ne.s32.totalorder %s91, %s92
    %p101 = scmp.eq.s32.totalorder %s18, 0
    %p102 = por %p100, %p101
    %p103 = scmp.ne.s32.totalorder %s91, %s92
    %p104 = scmp.eq.s32.totalorder %s19, 1
    %p105 = por %p103, %p104
    %p107 = scmp.ne.s32.totalorder %s92, %s106
    %p108 = scmp.eq.s32.totalorder %s19, 0
    %p109 = por %p107, %p108
    %s111 = sadd.s32 %s110, 1
    %p114 = scmp.eq.s32.totalorder %s13, 1
    %p115 = scmp.ne.s32.totalorder %s110, %s112
    %p116 = scmp.eq.s32.totalorder %s13, 0
    %p117 = por %p115, %p116
    %p118 = scmp.ne.s32.totalorder %s110, %s112
    %p119 = scmp.eq.s32.totalorder %s18, 1
    %p120 = por %p118, %p119
    %p121 = scmp.ne.s32.totalorder %s112, %s113
    %p122 = scmp.eq.s32.totalorder %s18, 0
    %p123 = por %p121, %p122
    %p124 = scmp.ne.s32.totalorder %s112, %s113
    %p125 = scmp.eq.s32.totalorder %s19, 1
    %p126 = por %p124, %p125
    %p128 = scmp.ne.s32.totalorder %s113, %s127
    %p129 = scmp.eq.s32.totalorder %s19, 0
    %p130 = por %p128, %p129
    %s132 = sadd.s32 %s131, 1
    %p135 = scmp.eq.s32.totalorder %s13, 1
    %p136 = scmp.ne.s32.totalorder %s131, %s133
    %p137 = scmp.eq.s32.totalorder %s13, 0
    %p138 = por %p136, %p137
    %p139 = scmp.ne.s32.totalorder %s131, %s133
    %p140 = scmp.eq.s32.totalorder %s18, 1
    %p141 = por %p139, %p140
    %p142 = scmp.ne.s32.totalorder %s133, %s134
    %p143 = scmp.eq.s32.totalorder %s18, 0
    %p144 = por %p142, %p143
    %p145 = scmp.ne.s32.totalorder %s133, %s134
    %p146 = scmp.eq.s32.totalorder %s19, 1
    %p147 = por %p145, %p146
    %p149 = scmp.ne.s32.totalorder %s134, %s148
    %p150 = scmp.eq.s32.totalorder %s19, 0
    %p151 = por %p149, %p150
    %s153 = sadd.s32 %s152, 1
    %p156 = scmp.eq.s32.totalorder %s13, 1
    %p157 = scmp.ne.s32.totalorder %s152, %s154
    %p158 = scmp.eq.s32.totalorder %s13, 0
    %p159 = por %p157, %p158
    %p160 = scmp.ne.s32.totalorder %s152, %s154
    %p161 = scmp.eq.s32.totalorder %s18, 1
    %p162 = por %p160, %p161
    %p163 = scmp.ne.s32.totalorder %s154, %s155
    %p164 = scmp.eq.s32.totalorder %s18, 0
    %p165 = por %p163, %p164
    %p166 = scmp.ne.s32.totalorder %s154, %s155
    %p167 = scmp.eq.s32.totalorder %s19, 1
    %p168 = por %p166, %p167
    %p170 = scmp.ne.s32.totalorder %s155, %s169
    %p171 = scmp.eq.s32.totalorder %s19, 0
    %p172 = por %p170, %p171
    %s173 = ssub.s32 %s13, %s20
    %p174 = scmp.eq.s32.totalorder %s173, 0
    %s176 = sadd.s32 %s175, 1
    %s177 = scalar_select %p174, %s175, %s176
    %p180 = pneg %p174
    %p181 = scmp.eq.s32.totalorder %s13, 1
    %p182 = por %p180, %p181
    %p183 = scmp.ne.s32.totalorder %s175, %s178
    %p184 = scmp.eq.s32.totalorder %s13, 0
    %p185 = por %p183, %p184
    %p186 = scmp.ne.s32.totalorder %s175, %s178
    %p187 = scmp.eq.s32.totalorder %s18, 1
    %p188 = por %p186, %p187
    %p189 = scmp.ne.s32.totalorder %s178, %s179
    %p190 = scmp.eq.s32.totalorder %s18, 0
    %p191 = por %p189, %p190
    %p192 = scmp.ne.s32.totalorder %s178, %s179
    %p193 = scmp.eq.s32.totalorder %s19, 1
    %p194 = por %p192, %p193
    %p196 = scmp.ne.s32.totalorder %s179, %s195
    %p197 = scmp.eq.s32.totalorder %s19, 0
    %p198 = por %p196, %p197
    %p199 = scmp.le.s32.totalorder 1, %s13
    %p200 = scmp.lt.s32.totalorder %s13, 3
    %p201 = pnand %p199, %p200
    %p202 = pneg %p201
    // Predicated region
    $region9: #{tpu_custom_call.1} parent=5 // pred_check
      _
    $region10: #{tpu_custom_call.1} parent=5 // pred_check_branch
      %204 = sbr.rel (%p201) target = $region12
    $region11: #{tpu_custom_call.1} parent=5 // pred_region
      %s205 = ssub.s32 %s13, 1
      // Predicated region
      $region13: #{tpu_custom_call.1} parent=11 // pred_check
        %p206 = pneg %p60
      $region14: #{tpu_custom_call.1} parent=11 // pred_check_branch
        %208 = sbr.rel (%p206) target = $region16
      $region15: #{tpu_custom_call.1} parent=11 // pred_region
        _
      $region16: #{tpu_custom_call.1} parent=11 // pred_fallthru
        _
      // Predicated region
      $region17: #{tpu_custom_call.1} parent=11 // pred_check
        %p209 = pneg %p81
      $region18: #{tpu_custom_call.1} parent=11 // pred_check_branch
        %211 = sbr.rel (%p209) target = $region20
      $region19: #{tpu_custom_call.1} parent=11 // pred_region
        _
      $region20: #{tpu_custom_call.1} parent=11 // pred_fallthru
        _
      // Predicated region
      $region21: #{tpu_custom_call.1} parent=11 // pred_check
        %p212 = pneg %p102
      $region22: #{tpu_custom_call.1} parent=11 // pred_check_branch
        %214 = sbr.rel (%p212) target = $region24
      $region23: #{tpu_custom_call.1} parent=11 // pred_region
        _
      $region24: #{tpu_custom_call.1} parent=11 // pred_fallthru
        _
      // Predicated region
      $region25: #{tpu_custom_call.1} parent=11 // pred_check
        %p215 = pneg %p123
      $region26: #{tpu_custom_call.1} parent=11 // pred_check_branch
        %217 = sbr.rel (%p215) target = $region28
      $region27: #{tpu_custom_call.1} parent=11 // pred_region
        _
      $region28: #{tpu_custom_call.1} parent=11 // pred_fallthru
        _
      // Predicated region
      $region29: #{tpu_custom_call.1} parent=11 // pred_check
        %p218 = pneg %p144
      $region30: #{tpu_custom_call.1} parent=11 // pred_check_branch
        %220 = sbr.rel (%p218) target = $region32
      $region31: #{tpu_custom_call.1} parent=11 // pred_region
        _
      $region32: #{tpu_custom_call.1} parent=11 // pred_fallthru
        _
      // Predicated region
      $region33: #{tpu_custom_call.1} parent=11 // pred_check
        %p221 = pneg %p165
      $region34: #{tpu_custom_call.1} parent=11 // pred_check_branch
        %223 = sbr.rel (%p221) target = $region36
      $region35: #{tpu_custom_call.1} parent=11 // pred_region
        _
      $region36: #{tpu_custom_call.1} parent=11 // pred_fallthru
        _
    $region12: #{tpu_custom_call.1} parent=5 // pred_fallthru
      _
    %p224 = scmp.lt.s32.totalorder %s13, 2
    // Predicated region
    $region37: #{tpu_custom_call.1} parent=5 // pred_check
      %p225 = pneg %p224
    $region38: #{tpu_custom_call.1} parent=5 // pred_check_branch
      %227 = sbr.rel (%p225) target = $region40
    $region39: #{tpu_custom_call.1} parent=5 // pred_region
      // Predicated region
      $region41: #{tpu_custom_call.1} parent=39 // pred_check
        %p228 = pneg %p33
      $region42: #{tpu_custom_call.1} parent=39 // pred_check_branch
        %230 = sbr.rel (%p228) target = $region44
      $region43: #{tpu_custom_call.1} parent=39 // pred_region
        %s231 = smul.u32 2, %s13
        %p232 = scmp.lt.s32.totalorder %s231, 3
        %s233 = scalar_select %p232, %s231, 3
        %s234 = smul.addr %s233, 8
        %s235 = scalar_lea.vmem %s0, %s234
        %s236 = smul.u32 2, %s13
      $region44: #{tpu_custom_call.1} parent=39 // pred_fallthru
        _
    $region40: #{tpu_custom_call.1} parent=5 // pred_fallthru
      _
    %p237 = scmp.le.s32.totalorder 1, %s13
    %p238 = scmp.lt.s32.totalorder %s13, 3
    %p239 = pnand %p237, %p238
    %p240 = pneg %p239
    // Predicated region
    $region45: #{tpu_custom_call.1} parent=5 // pred_check
      _
    $region46: #{tpu_custom_call.1} parent=5 // pred_check_branch
      %242 = sbr.rel (%p239) target = $region48
    $region47: #{tpu_custom_call.1} parent=5 // pred_region
      %s243 = ssub.s32 %s13, 1
      %s244 = smul.u32 2, %s18
      %p245 = scmp.lt.s32.totalorder %s244, 3
      %s246 = scalar_select %p245, %s244, 3
      %s247 = smul.addr %s246, 8
      %s248 = scalar_lea.vmem %s0, %s247
      %p249 = pneg %p39
      %p250 = pneg %p36
      %p251 = pneg %p60
      %p252 = pneg %p57
      %p253 = pneg %p81
      %p254 = pneg %p78
      %p255 = pneg %p102
      %p256 = pneg %p99
      %p257 = pneg %p123
      %p258 = pneg %p120
      %p259 = pneg %p144
      %p260 = pneg %p141
      %p261 = pneg %p165
      %p262 = pneg %p162
      %p263 = pneg %p191
      %p264 = pneg %p188
      %s265 = smul.u32 2, %s18
      %p266 = scmp.lt.s32.totalorder %s265, 3
      %s267 = scalar_select %p266, %s265, 3
      %s268 = smul.addr %s267, 8
      %s269 = scalar_lea.vmem %s7, %s268
      %s270 = smul.u32 2, %s18
      %p271 = scmp.lt.s32.totalorder %s270, 3
      %s272 = scalar_select %p271, %s270, 3
      %s273 = smul.addr %s272, 8
      %s274 = scalar_lea.vmem %s0, %s273
      %s275 = smul.u32 2, %s18
      %s276 = smul.u32 2, %s18
      %p277 = scmp.lt.s32.totalorder %s276, 3
      %s278 = scalar_select %p277, %s276, 3
      %s279 = smul.addr %s278, 8
      %s280 = scalar_lea.vmem %s7, %s279
      %s281 = smul.u32 2, %s18
      %v282 = vld [vmem:[%s274] sm:$0xff]
      %v283 = vld [vmem:[%s274 + $0x8] sm:$0xff]
      %v284 = vld [vmem:[%s1] sm:$0xff]
      %v285 = vld [vmem:[%s1 + $0x8] sm:$0xff]
      %v286 = vld [vmem:[%s2] sm:$0x1]
      %v288 = vperm.slane %v286, 0
      %vm290 = vcmask 130048
      %v292 = vsel %vm290, %v282, 0
      %v295 = vsel %vm290, %v283, 0
      %297 = vmatpush.msra.mxu0 0.0
      %298 = vmatpush.msra.mxu0 0.0
      %299 = vmatpush.msra.mxu0 0.0
      %300 = vmatpush.msra.mxu0 0.0
      %301 = vmatpush.msra.mxu0 0.0
      %302 = vmatpush.msra.mxu0 0.0
      %303 = vmatpush.msra.mxu0 0.0
      %304 = vmatpush.msra.mxu0 0.0
      %305 = vmatpush.msra.mxu0 0.0
      %306 = vmatpush.msra.mxu0 0.0
      %307 = vmatpush.msra.mxu0 0.0
      %308 = vmatpush.msra.mxu0 0.0
      %309 = vmatpush.msra.mxu0 0.0
      %310 = vmatpush.msra.mxu0 0.0
      %311 = vmatpush.msra.mxu0 %v285
      %312 = vmatpush.msra.mxu0 %v284
      %313 = vmatmul.f32.gmra.mxu0 %v292
      %v314 = vpop.f32.mrf.mxu0
      %v315 = vadd.f32 %v288, %v314
      %316 = vmatmul.f32.gmra.mxu0 %v295
      %v317 = vpop.f32.mrf.mxu0
      %v318 = vadd.f32 %v288, %v317
      %319 = vdwg.mxu0
      %v320 = vmax.f32 %v315, 0.0
      %v321 = vmax.f32 %v318, 0.0
      %v322 = vld [vmem:[%s3] sm:$0xff]
      %v323 = vld [vmem:[%s3 + $0x8] sm:$0xff]
      %v324 = vld [vmem:[%s3 + $0x10] sm:$0xff]
      %v325 = vld [vmem:[%s3 + $0x18] sm:$0xff]
      %v326 = vld [vmem:[%s3 + $0x20] sm:$0xff]
      %v327 = vld [vmem:[%s3 + $0x28] sm:$0xff]
      %v328 = vld [vmem:[%s3 + $0x30] sm:$0xff]
      %v329 = vld [vmem:[%s3 + $0x38] sm:$0xff]
      %v330 = vld [vmem:[%s3 + $0x40] sm:$0xff]
      %v331 = vld [vmem:[%s3 + $0x48] sm:$0xff]
      %v332 = vld [vmem:[%s3 + $0x50] sm:$0xff]
      %v333 = vld [vmem:[%s3 + $0x58] sm:$0xff]
      %v334 = vld [vmem:[%s3 + $0x60] sm:$0xff]
      %v335 = vld [vmem:[%s3 + $0x68] sm:$0xff]
      %v336 = vld [vmem:[%s3 + $0x70] sm:$0xff]
      %v337 = vld [vmem:[%s3 + $0x78] sm:$0xff]
      %v338 = vld [vmem:[%s4] sm:$0x1]
      %v340 = vperm.slane %v338, 0
      %342 = vmatpush.msra.mxu0 %v337
      %343 = vmatpush.msra.mxu0 %v336
      %344 = vmatpush.msra.mxu0 %v335
      %345 = vmatpush.msra.mxu0 %v334
      %346 = vmatpush.msra.mxu0 %v333
      %347 = vmatpush.msra.mxu0 %v332
      %348 = vmatpush.msra.mxu0 %v331
      %349 = vmatpush.msra.mxu0 %v330
      %350 = vmatpush.msra.mxu0 %v329
      %351 = vmatpush.msra.mxu0 %v328
      %352 = vmatpush.msra.mxu0 %v327
      %353 = vmatpush.msra.mxu0 %v326
      %354 = vmatpush.msra.mxu0 %v325
      %355 = vmatpush.msra.mxu0 %v324
      %356 = vmatpush.msra.mxu0 %v323
      %357 = vmatpush.msra.mxu0 %v322
      %358 = vmatmul.f32.gmra.mxu0 %v320
      %v359 = vpop.f32.mrf.mxu0
      %v360 = vadd.f32 %v340, %v359
      %361 = vmatmul.f32.gmra.mxu0 %v321
      %v362 = vpop.f32.mrf.mxu0
      %v363 = vadd.f32 %v340, %v362
      %364 = vdwg.mxu0
      %v365 = vmax.f32 %v360, 0.0
      %v366 = vmax.f32 %v363, 0.0
      %v367 = vld [vmem:[%s5] sm:$0xff]
      %v368 = vld [vmem:[%s5 + $0x8] sm:$0xff]
      %v369 = vld [vmem:[%s5 + $0x10] sm:$0xff]
      %v370 = vld [vmem:[%s5 + $0x18] sm:$0xff]
      %v371 = vld [vmem:[%s5 + $0x20] sm:$0xff]
      %v372 = vld [vmem:[%s5 + $0x28] sm:$0xff]
      %v373 = vld [vmem:[%s5 + $0x30] sm:$0xff]
      %v374 = vld [vmem:[%s5 + $0x38] sm:$0xff]
      %v375 = vld [vmem:[%s5 + $0x40] sm:$0xff]
      %v376 = vld [vmem:[%s5 + $0x48] sm:$0xff]
      %v377 = vld [vmem:[%s5 + $0x50] sm:$0xff]
      %v378 = vld [vmem:[%s5 + $0x58] sm:$0xff]
      %v379 = vld [vmem:[%s5 + $0x60] sm:$0xff]
      %v380 = vld [vmem:[%s5 + $0x68] sm:$0xff]
      %v381 = vld [vmem:[%s5 + $0x70] sm:$0xff]
      %v382 = vld [vmem:[%s5 + $0x78] sm:$0xff]
      %v383 = vld [vmem:[%s6] sm:$0x1]
      %v385 = vperm.slane %v383, 0
      %387 = vmatpush.msra.mxu0 %v382
      %388 = vmatpush.msra.mxu0 %v381
      %389 = vmatpush.msra.mxu0 %v380
      %390 = vmatpush.msra.mxu0 %v379
      %391 = vmatpush.msra.mxu0 %v378
      %392 = vmatpush.msra.mxu0 %v377
      %393 = vmatpush.msra.mxu0 %v376
      %394 = vmatpush.msra.mxu0 %v375
      %395 = vmatpush.msra.mxu0 %v374
      %396 = vmatpush.msra.mxu0 %v373
      %397 = vmatpush.msra.mxu0 %v372
      %398 = vmatpush.msra.mxu0 %v371
      %399 = vmatpush.msra.mxu0 %v370
      %400 = vmatpush.msra.mxu0 %v369
      %401 = vmatpush.msra.mxu0 %v368
      %402 = vmatpush.msra.mxu0 %v367
      %403 = vmatmul.f32.gmra.mxu0 %v365
      %v404 = vpop.f32.mrf.mxu0
      %v405 = vadd.f32 %v385, %v404
      %406 = vmatmul.f32.gmra.mxu0 %v366
      %v407 = vpop.f32.mrf.mxu0
      %v408 = vadd.f32 %v385, %v407
      %409 = vdwg.mxu0
      %vm410 = vcmask 64512
      %v411 = vsel %vm410, %v405, -inf
      %412 = vmax.xlane.f32.xlu0 %v411
      %v413 = vpop.xlane.xlu0 %412
      %v414 = vsel %vm410, %v408, -inf
      %415 = vmax.xlane.f32.xlu0 %v414
      %v416 = vpop.xlane.xlu0 %415
      %v417 = vsub.f32 %v405, %v413
      %v418 = vsub.f32 %v408, %v416
      %v419 = vmul.f32 %v417, 1.442695
      %v420 = vpow.pop %v419
      %v421 = vmul.f32 %v418, 1.442695
      %v422 = vpow.pop %v421
      %v423 = vsel %vm410, %v420, 0.0
      %424 = vadd.xlane.f32.xlu0 %v423
      %v425 = vpop.xlane.xlu0 %424
      %v426 = vsel %vm410, %v422, 0.0
      %427 = vadd.xlane.f32.xlu0 %v426
      %v428 = vpop.xlane.xlu0 %427
      %v429 = vrcp.pop %v425
      %v430 = vmul.f32 %v425, %v429
      %v431 = vsub.f32 1.0, %v430
      %v432 = vmul.f32 %v429, %v431
      %v433 = vadd.f32 %v429, %v432
      %vm434 = vweird.f32 %v425
      %vm435 = vweird.f32 %v429
      %vm436 = vmor %vm434, %vm435
      %v437 = vsel %vm436, %v429, %v433
      %v438 = vand.u32 2147483647, %v425
      %vm439 = vcmp.eq.f32.partialorder %v438, 8.507059e+37
      %v440 = vand.u32 %v425, 2147483648
      %v441 = vor.u32 1.1754944e-38, %v440
      %v442 = vsel %vm439, %v441, %v437
      %v443 = vrcp.pop %v428
      %v444 = vmul.f32 %v428, %v443
      %v445 = vsub.f32 1.0, %v444
      %v446 = vmul.f32 %v443, %v445
      %v447 = vadd.f32 %v443, %v446
      %vm448 = vweird.f32 %v428
      %vm449 = vweird.f32 %v443
      %vm450 = vmor %vm448, %vm449
      %v451 = vsel %vm450, %v443, %v447
      %v452 = vand.u32 2147483647, %v428
      %vm453 = vcmp.eq.f32.partialorder %v452, 8.507059e+37
      %v454 = vand.u32 %v428, 2147483648
      %v455 = vor.u32 1.1754944e-38, %v454
      %v456 = vsel %vm453, %v455, %v451
      %v457 = vmul.f32 %v420, %v442
      %v458 = vmul.f32 %v422, %v456
      %459 = vst.msk [vmem:[%s280] sm:$0xff] %vm410, %v457
      %460 = vst.msk [vmem:[%s280 + $0x8] sm:$0xff] %vm410, %v458
      %s461 = smul.u32 2, %s18
      %p462 = scmp.lt.s32.totalorder %s461, 3
      %s463 = scalar_select %p462, %s461, 3
      %s464 = smul.addr %s463, 8
      %s465 = scalar_lea.vmem %s7, %s464
      // Predicated region
      $region49: #{tpu_custom_call.1} parent=47 // pred_check
        %p466 = pneg %p188
      $region50: #{tpu_custom_call.1} parent=47 // pred_check_branch
        %468 = sbr.rel (%p466) target = $region52
      $region51: #{tpu_custom_call.1} parent=47 // pred_region
        %s469 = smul.u32 2, %s18
      $region52: #{tpu_custom_call.1} parent=47 // pred_fallthru
        _
    $region48: #{tpu_custom_call.1} parent=5 // pred_fallthru
      _
    %p470 = scmp.le.s32.totalorder 2, %s13
    // Predicated region
    $region53: #{tpu_custom_call.1} parent=5 // pred_check
      %p471 = pneg %p470
    $region54: #{tpu_custom_call.1} parent=5 // pred_check_branch
      %473 = sbr.rel (%p471) target = $region56
    $region55: #{tpu_custom_call.1} parent=5 // pred_region
      %s474 = ssub.s32 %s13, 2
      // Predicated region
      $region57: #{tpu_custom_call.1} parent=55 // pred_check
        %p475 = pneg %p194
      $region58: #{tpu_custom_call.1} parent=55 // pred_check_branch
        %477 = sbr.rel (%p475) target = $region60
      $region59: #{tpu_custom_call.1} parent=55 // pred_region
        %s478 = smul.u32 2, %s19
        %p479 = scmp.lt.s32.totalorder %s478, 3
        %s480 = scalar_select %p479, %s478, 3
        %s481 = smul.addr %s480, 8
        %s482 = scalar_lea.vmem %s7, %s481
      $region60: #{tpu_custom_call.1} parent=55 // pred_fallthru
        _
    $region56: #{tpu_custom_call.1} parent=5 // pred_fallthru
      _
  $region6: #{tpu_custom_call.1} parent=0 // loop_footer
    %s17 = sadd.s32 1, %s13
  $region7: #{tpu_custom_call.1} parent=0 // loop_footer_branch
    %12 = sbr.rel target = $region3
  $region8: #{tpu_custom_call.1} parent=0 // loop_exit
    _

</llo_original>
